<compile_context>
chip_gen: v5e
topology: v5e:2x2
jax: 0.10.0
libtpu: 0.0.40
codegen_flags: <defaults>
</compile_context>

<pallas_src>
import jax
import jax.numpy as jnp
from jax.experimental import pallas as pl
from jax.experimental.pallas import tpu as pltpu


# ---------------------------------------------------------------------------
# Small helpers
# ---------------------------------------------------------------------------
def _rup(x, m):
    return ((x + m - 1) // m) * m


def _pad2d(x, rows, cols):
    r, c = x.shape
    return jnp.pad(x, ((0, rows - r), (0, cols - c)))


def _full_spec(arr):
    nd = arr.ndim
    return pl.BlockSpec(arr.shape, lambda i, nd=nd: (0,) * nd)


# ---------------------------------------------------------------------------
# One-time input preparation: cast + pad + pack (NOT in the per-call hot path)
# ---------------------------------------------------------------------------
def prepare_gcn_inputs(params, nf, *, matmul_dtype=jnp.bfloat16):
    """Cast to `matmul_dtype`, zero-pad to lane-dense shapes, and pack all
    operands into one contiguous buffer per distinct padded width plus one small
    f32 bias buffer.  Call ONCE per parameter / graph snapshot."""
    n_layers = params["n_layers"]
    mm = matmul_dtype

    in_feats, n_hidden = params["W_in"].shape
    n_classes = params["layers"][-1][0].shape[1]

    fp = _rup(in_feats, 128)
    hp = _rup(n_hidden, 128)
    cp = _rup(n_classes, 128)

    # node counts per NodeFlow layer, and their lane-dense padded versions
    n_nodes = [nf["adj"][0].shape[1]] + [nf["adj"][i].shape[0] for i in range(n_layers)]
    src_pad = [_rup(n, 128) for n in n_nodes[:n_layers]]          # adj contraction dims
    dst_pad = src_pad[1:] + [_rup(n_nodes[n_layers], 8)]

    ops = []  # (name, padded matmul_dtype array) in kernel-visit order

    def add(name, x, rows, cols):
        ops.append((name, _pad2d(jnp.asarray(x, jnp.float32), rows, cols).astype(mm)))

    add("pre", nf["preprocess"], src_pad[0], fp)
    add("W_in", params["W_in"], fp, hp)
    flops = 2 * src_pad[0] * fp * hp

    for i in range(n_layers):
        # number of halves of the (virtual) concat feeding this layer
        p_in = 2 if i == n_layers - 1 else 1
        out_w = cp if i == n_layers - 1 else hp
        w, _ = params["layers"][i]
        add(f"adj{i}", nf["adj"][i], dst_pad[i], src_pad[i])
        for p in range(p_in):
            sl = slice(p * n_hidden, (p + 1) * n_hidden)
            add(f"hist{i}_{p}", nf["h_hist"][i][:, sl], src_pad[i], hp)
            add(f"aggh{i}_{p}", nf["agg_h"][i][:, sl], dst_pad[i], hp)
            add(f"W{i}_{p}", w[sl, :], hp, out_w)
        flops += 2 * p_in * dst_pad[i] * (src_pad[i] * hp + hp * out_w)

    # pack by padded width -> one contiguous buffer (one prologue DMA) per width
    widths = sorted({a.shape[1] for _, a in ops})
    groups = {wd: [] for wd in widths}
    slots = {}
    for name, a in ops:
        wd = a.shape[1]
        slots[name] = (widths.index(wd), sum(x.shape[0] for x in groups[wd]), a.shape[0])
        groups[wd].append(a)
    bufs = tuple(jnp.concatenate(groups[wd], axis=0) for wd in widths)

    # tiny f32 bias buffer (single (8,128)-ish tile): row j = bias of linear j
    bias_w = max(hp, cp)
    biases = [params["b_in"]] + [params["layers"][i][1] for i in range(n_layers)]
    bias_buf = jnp.stack(
        [jnp.pad(jnp.asarray(b, jnp.float32), (0, bias_w - b.shape[0])) for b in biases])

    bytes_accessed = int(sum(b.size * b.dtype.itemsize for b in bufs)
                         + bias_buf.size * 4 + dst_pad[-1] * cp * 4)

    meta = dict(n_layers=n_layers, mm_dtype=mm, slots=slots, n_bufs=len(bufs),
                hp=hp, cp=cp, n_out=n_nodes[n_layers], n_classes=n_classes,
                flops=int(flops), bytes_accessed=bytes_accessed)
    return bufs, bias_buf, meta


# ---------------------------------------------------------------------------
# Fused Pallas kernel: whole GCNSampling forward in one call
# ---------------------------------------------------------------------------
def _make_gcn_kernel(meta):
    n_layers = meta["n_layers"]
    slots = meta["slots"]
    n_bufs = meta["n_bufs"]
    mm = meta["mm_dtype"]
    hp, cp, n_out = meta["hp"], meta["cp"], meta["n_out"]

    def kernel(*refs):
        bufs = refs[:n_bufs]
        b_all = refs[n_bufs][...]                 # (n_layers+1, bias_w) f32, one tile
        out_ref = refs[n_bufs + 1]

        def get(name):                            # static, 8-aligned row slice
            bi, r0, nr = slots[name]
            return bufs[bi][r0:r0 + nr, :]

        # ---- input linear + activation ------------------------------------
        y = jnp.dot(get("pre"), get("W_in"), preferred_element_type=jnp.float32)
        y = y + b_all[0:1, :hp]
        parts = [y, jnp.maximum(y, 0.0)] if n_layers == 1 else [jnp.maximum(y, 0.0)]

        # ---- per layer: aggregate(h - history), then NodeUpdate ------------
        # The concat skip is carried as `parts` (halves); the consuming linear
        # is evaluated as a sum of per-half matmuls, so no concat is built.
        for i in range(n_layers):
            adj = get(f"adj{i}")                  # row-normalized sampled adjacency
            out_w = cp if i == n_layers - 1 else hp
            y = b_all[i + 1:i + 2, :out_w]        # start from the bias, broadcasts
            for p, h_p in enumerate(parts):
                hist = get(f"hist{i}_{p}").astype(jnp.float32)
                msg = (h_p - hist).astype(mm)     # f32 sub in-register, cast for MXU
                agg = jnp.dot(adj, msg, preferred_element_type=jnp.float32)
                x = (agg + get(f"aggh{i}_{p}").astype(jnp.float32)).astype(mm)
                y = y + jnp.dot(x, get(f"W{i}_{p}"), preferred_element_type=jnp.float32)

            if i == n_layers - 1:
                parts = [y]                       # last layer: no activation
            elif i == n_layers - 2:
                parts = [y, jnp.maximum(y, 0.0)]  # skip_start layer: (y, relu(y))
            else:
                parts = [jnp.maximum(y, 0.0)]

        out_ref[...] = parts[0][:n_out, :]        # lane-dense (128-wide) final store

    return kernel


def gcn_sampling_forward(bufs, bias_buf, meta):
    """Hot path: ONE pallas_call on pre-packed inputs (no wrapper-side cast / pad
    / slice).  Returns (n_out, round_up(n_classes,128)) f32; real logits are
    out[:, :meta['n_classes']] and the padded columns are exactly zero."""
    args = (*bufs, bias_buf)
    out_shape = jax.ShapeDtypeStruct((meta["n_out"], meta["cp"]), jnp.float32)
    return pl.pallas_call(
        _make_gcn_kernel(meta),
        out_shape=out_shape,
        grid=(1,),
        in_specs=[_full_spec(a) for a in args],
        out_specs=pl.BlockSpec((meta["n_out"], meta["cp"]), lambda i: (0, 0)),
        compiler_params=pltpu.CompilerParams(
            dimension_semantics=("arbitrary",),
        ),
        cost_estimate=pl.CostEstimate(
            flops=meta["flops"],
            transcendentals=0,
            bytes_accessed=meta["bytes_accessed"]),
    )(*args)


# ---------------------------------------------------------------------------
# Pure-JAX reference (mirrors the module; mirrors the kernel's dtype handling)
# ---------------------------------------------------------------------------
def gcn_sampling_reference(params, nf, matmul_dtype=jnp.float32):
    mm = matmul_dtype

    def mdot(a, b):
        return jnp.dot(a.astype(mm), b.astype(mm), preferred_element_type=jnp.float32)

    def stored(x):  # history streams are stored in `mm` by the kernel's prep
        return x.astype(mm).astype(jnp.float32)

    n_layers = params["n_layers"]
    y = mdot(nf["preprocess"], params["W_in"]) + params["b_in"]
    h = jnp.concatenate([y, jax.nn.relu(y)], 1) if n_layers == 1 else jax.nn.relu(y)
    for i in range(n_layers):
        agg = mdot(nf["adj"][i], h - stored(nf["h_hist"][i]))
        x = agg + stored(nf["agg_h"][i])
        w, b = params["layers"][i]
        y = mdot(x, w) + b
        if i == n_layers - 1:
            h = y
        elif i == n_layers - 2:
            h = jnp.concatenate([y, jax.nn.relu(y)], 1)
        else:
            h = jax.nn.relu(y)
    return h


# ---------------------------------------------------------------------------
# Deterministic setup
# ---------------------------------------------------------------------------
def _linear_init(key, fin, fout):
    # PyTorch nn.Linear default: U(-1/sqrt(fin), 1/sqrt(fin)); stored as (fin, fout).
    kw, kb = jax.random.split(key)
    bound = 1.0 / (fin ** 0.5)
    w = jax.random.uniform(kw, (fin, fout), jnp.float32, -bound, bound)
    b = jax.random.uniform(kb, (fout,), jnp.float32, -bound, bound)
    return w, b


def _row_norm_adj(key, n_dst, n_src):
    mask = (jax.random.uniform(key, (n_dst, n_src)) < 0.3).astype(jnp.float32)
    mask = mask.at[:, 0].set(1.0)  # guarantee degree >= 1
    deg = mask.sum(axis=1, keepdims=True)
    return mask / deg  # row-normalized -> matmul == mean of sampled neighbors


if __name__ == "__main__":
    # module config: GCNSampling(in_feats, n_hidden, n_classes, n_layers, ReLU, dropout=0)
    in_feats, n_hidden, n_classes, n_layers = 64, 64, 16, 2
    # NodeFlow layer sizes (layer 0 -> layer 1 -> layer 2)
    n_nodes = [128, 64, 32]

    key = jax.random.PRNGKey(0)
    keys = jax.random.split(key, 16)

    # parameters
    W_in, b_in = _linear_init(keys[0], in_feats, n_hidden)
    layer_params = []
    for j in range(1, n_layers):  # hidden NodeUpdates
        layer_params.append(_linear_init(keys[j], n_hidden, n_hidden))
    layer_params.append(_linear_init(keys[n_layers], 2 * n_hidden, n_classes))
    params = {"n_layers": n_layers, "W_in": W_in, "b_in": b_in, "layers": layer_params}

    # NodeFlow data (synthetic, deterministic)
    feat_dims = [n_hidden] + [2 * n_hidden] * (n_layers - 1)  # dim of h at each src layer
    nf = {
        "preprocess": jax.random.normal(keys[5], (n_nodes[0], in_feats), jnp.float32),
        "h_hist": [
            jax.random.normal(keys[6 + i], (n_nodes[i], feat_dims[i]), jnp.float32) * 0.1
            for i in range(n_layers)
        ],
        "agg_h": [
            jax.random.normal(keys[9 + i], (n_nodes[i + 1], feat_dims[i]), jnp.float32) * 0.1
            for i in range(n_layers)
        ],
        "adj": [
            _row_norm_adj(keys[12 + i], n_nodes[i + 1], n_nodes[i])
            for i in range(n_layers)
        ],
    }

    # 1) exact-algorithm check: full-f32 operands vs f32 reference
    bufs32, bias32, meta32 = prepare_gcn_inputs(params, nf, matmul_dtype=jnp.float32)
    out32 = jax.block_until_ready(gcn_sampling_forward(bufs32, bias32, meta32))
    assert out32.shape == (n_nodes[-1], meta32["cp"]), out32.shape
    ref32 = gcn_sampling_reference(params, nf, jnp.float32)
    err32 = float(jnp.max(jnp.abs(out32[:, :n_classes] - ref32)))
    assert jnp.allclose(out32[:, :n_classes], ref32, atol=1e-4, rtol=1e-4), err32

    # 2) default fast path: bf16 matmul/history operands, f32 accumulation
    bufs, bias_buf, meta = prepare_gcn_inputs(params, nf)     # one-time prep
    out = jax.block_until_ready(gcn_sampling_forward(bufs, bias_buf, meta))
    assert out.shape == (n_nodes[-1], meta["cp"]), out.shape
    ref = gcn_sampling_reference(params, nf, jnp.bfloat16)
    err = float(jnp.max(jnp.abs(out[:, :n_classes] - ref)))
    assert jnp.allclose(out[:, :n_classes], ref, atol=2e-3, rtol=2e-2), err

    print("KERNEL_OK")
</pallas_src>

<mosaic_0001>
module attributes {stable_mosaic.version = 11 : i64} {
  func.func @kernel(%arg0: i32, %arg1: memref<1376x128xf32, #tpu.memory_space<vmem>>, %arg2: memref<3x128xf32, #tpu.memory_space<vmem>>, %arg3: memref<32x128xf32, #tpu.memory_space<vmem>>) attributes {dimension_semantics = [#tpu.dimension_semantics<arbitrary>], iteration_bounds = array<i64: 1>, scalar_prefetch = 0 : i64, scratch_operands = 0 : i64, tpu.core_type = #tpu.core_type<tc>, window_params = [{pipeline_mode = #tpu.pipeline_mode<synchronous>, transform_indices = @transform_0, window_bounds = array<i64: 1376, 128>}, {pipeline_mode = #tpu.pipeline_mode<synchronous>, transform_indices = @transform_1, window_bounds = array<i64: 3, 128>}, {pipeline_mode = #tpu.pipeline_mode<synchronous>, transform_indices = @transform_2, window_bounds = array<i64: 32, 128>}]} {
    %c0 = arith.constant 0 : index
    %c0_0 = arith.constant 0 : index
    %0 = vector.load %arg2[%c0, %c0_0] : memref<3x128xf32, #tpu.memory_space<vmem>>, vector<3x128xf32>
    %c0_1 = arith.constant 0 : index
    %c0_2 = arith.constant 0 : index
    %1 = vector.load %arg1[%c0_1, %c0_2] : memref<1376x128xf32, #tpu.memory_space<vmem>>, vector<128x128xf32>
    %c128 = arith.constant 128 : index
    %c0_3 = arith.constant 0 : index
    %2 = vector.load %arg1[%c128, %c0_3] : memref<1376x128xf32, #tpu.memory_space<vmem>>, vector<128x128xf32>
    %cst = arith.constant dense<0.000000e+00> : vector<128x128xf32>
    %3 = tpu.matmul %1, %2, %cst {dimension_numbers = #tpu.dot_dimension_numbers<[1], [0], [0], [1], [0, 0, 1, 1], [], []>} : vector<128x128xf32>, vector<128x128xf32>, vector<128x128xf32> -> vector<128x128xf32>
    %4 = vector.extract_strided_slice %0 {offsets = [0, 0], sizes = [1, 128], strides = [1, 1]} : vector<3x128xf32> to vector<1x128xf32>
    %5 = vector.broadcast %4 : vector<1x128xf32> to vector<128x128xf32>
    %6 = arith.addf %3, %5 : vector<128x128xf32>
    %cst_4 = arith.constant 0.000000e+00 : f32
    %7 = vector.broadcast %cst_4 : f32 to vector<128x128xf32>
    %8 = arith.maximumf %6, %7 : vector<128x128xf32>
    %c256 = arith.constant 256 : index
    %c0_5 = arith.constant 0 : index
    %9 = vector.load %arg1[%c256, %c0_5] : memref<1376x128xf32, #tpu.memory_space<vmem>>, vector<128x128xf32>
    %10 = vector.extract_strided_slice %0 {offsets = [1, 0], sizes = [1, 128], strides = [1, 1]} : vector<3x128xf32> to vector<1x128xf32>
    %c384 = arith.constant 384 : index
    %c0_6 = arith.constant 0 : index
    %11 = vector.load %arg1[%c384, %c0_6] : memref<1376x128xf32, #tpu.memory_space<vmem>>, vector<128x128xf32>
    %12 = arith.subf %8, %11 : vector<128x128xf32>
    %cst_7 = arith.constant dense<0.000000e+00> : vector<128x128xf32>
    %13 = tpu.matmul %9, %12, %cst_7 {dimension_numbers = #tpu.dot_dimension_numbers<[1], [0], [0], [1], [0, 0, 1, 1], [], []>} : vector<128x128xf32>, vector<128x128xf32>, vector<128x128xf32> -> vector<128x128xf32>
    %c512 = arith.constant 512 : index
    %c0_8 = arith.constant 0 : index
    %14 = vector.load %arg1[%c512, %c0_8] : memref<1376x128xf32, #tpu.memory_space<vmem>>, vector<128x128xf32>
    %15 = arith.addf %13, %14 : vector<128x128xf32>
    %c640 = arith.constant 640 : index
    %c0_9 = arith.constant 0 : index
    %16 = vector.load %arg1[%c640, %c0_9] : memref<1376x128xf32, #tpu.memory_space<vmem>>, vector<128x128xf32>
    %cst_10 = arith.constant dense<0.000000e+00> : vector<128x128xf32>
    %17 = tpu.matmul %15, %16, %cst_10 {dimension_numbers = #tpu.dot_dimension_numbers<[1], [0], [0], [1], [0, 0, 1, 1], [], []>} : vector<128x128xf32>, vector<128x128xf32>, vector<128x128xf32> -> vector<128x128xf32>
    %18 = vector.broadcast %10 : vector<1x128xf32> to vector<128x128xf32>
    %19 = arith.addf %18, %17 : vector<128x128xf32>
    %cst_11 = arith.constant 0.000000e+00 : f32
    %20 = vector.broadcast %cst_11 : f32 to vector<128x128xf32>
    %21 = arith.maximumf %19, %20 : vector<128x128xf32>
    %c768 = arith.constant 768 : index
    %c0_12 = arith.constant 0 : index
    %22 = vector.load %arg1[%c768, %c0_12] : memref<1376x128xf32, #tpu.memory_space<vmem>>, vector<32x128xf32>
    %23 = vector.extract_strided_slice %0 {offsets = [2, 0], sizes = [1, 128], strides = [1, 1]} : vector<3x128xf32> to vector<1x128xf32>
    %c800 = arith.constant 800 : index
    %c0_13 = arith.constant 0 : index
    %24 = vector.load %arg1[%c800, %c0_13] : memref<1376x128xf32, #tpu.memory_space<vmem>>, vector<128x128xf32>
    %25 = arith.subf %19, %24 : vector<128x128xf32>
    %cst_14 = arith.constant dense<0.000000e+00> : vector<32x128xf32>
    %26 = tpu.matmul %22, %25, %cst_14 {dimension_numbers = #tpu.dot_dimension_numbers<[1], [0], [0], [1], [0, 0, 1, 1], [], []>} : vector<32x128xf32>, vector<128x128xf32>, vector<32x128xf32> -> vector<32x128xf32>
    %c928 = arith.constant 928 : index
    %c0_15 = arith.constant 0 : index
    %27 = vector.load %arg1[%c928, %c0_15] : memref<1376x128xf32, #tpu.memory_space<vmem>>, vector<32x128xf32>
    %28 = arith.addf %26, %27 : vector<32x128xf32>
    %c960 = arith.constant 960 : index
    %c0_16 = arith.constant 0 : index
    %29 = vector.load %arg1[%c960, %c0_16] : memref<1376x128xf32, #tpu.memory_space<vmem>>, vector<128x128xf32>
    %cst_17 = arith.constant dense<0.000000e+00> : vector<32x128xf32>
    %30 = tpu.matmul %28, %29, %cst_17 {dimension_numbers = #tpu.dot_dimension_numbers<[1], [0], [0], [1], [0, 0, 1, 1], [], []>} : vector<32x128xf32>, vector<128x128xf32>, vector<32x128xf32> -> vector<32x128xf32>
    %31 = vector.broadcast %23 : vector<1x128xf32> to vector<32x128xf32>
    %32 = arith.addf %31, %30 : vector<32x128xf32>
    %c1088 = arith.constant 1088 : index
    %c0_18 = arith.constant 0 : index
    %33 = vector.load %arg1[%c1088, %c0_18] : memref<1376x128xf32, #tpu.memory_space<vmem>>, vector<128x128xf32>
    %34 = arith.subf %21, %33 : vector<128x128xf32>
    %cst_19 = arith.constant dense<0.000000e+00> : vector<32x128xf32>
    %35 = tpu.matmul %22, %34, %cst_19 {dimension_numbers = #tpu.dot_dimension_numbers<[1], [0], [0], [1], [0, 0, 1, 1], [], []>} : vector<32x128xf32>, vector<128x128xf32>, vector<32x128xf32> -> vector<32x128xf32>
    %c1216 = arith.constant 1216 : index
    %c0_20 = arith.constant 0 : index
    %36 = vector.load %arg1[%c1216, %c0_20] : memref<1376x128xf32, #tpu.memory_space<vmem>>, vector<32x128xf32>
    %37 = arith.addf %35, %36 : vector<32x128xf32>
    %c1248 = arith.constant 1248 : index
    %c0_21 = arith.constant 0 : index
    %38 = vector.load %arg1[%c1248, %c0_21] : memref<1376x128xf32, #tpu.memory_space<vmem>>, vector<128x128xf32>
    %cst_22 = arith.constant dense<0.000000e+00> : vector<32x128xf32>
    %39 = tpu.matmul %37, %38, %cst_22 {dimension_numbers = #tpu.dot_dimension_numbers<[1], [0], [0], [1], [0, 0, 1, 1], [], []>} : vector<32x128xf32>, vector<128x128xf32>, vector<32x128xf32> -> vector<32x128xf32>
    %40 = arith.addf %32, %39 : vector<32x128xf32>
    %c0_23 = arith.constant 0 : index
    %c0_24 = arith.constant 0 : index
    %41 = vector.load %arg3[%c0_23, %c0_24] : memref<32x128xf32, #tpu.memory_space<vmem>>, vector<32x128xf32>
    tpu.vector_store %arg3[%c0_23, %c0_24], %40 {strides = array<i32>} : memref<32x128xf32, #tpu.memory_space<vmem>>, vector<32x128xf32>,
    return
  }
  func.func @transform_0(%arg0: i32) -> (i32, i32) {
    %c0_i32 = arith.constant 0 : i32
    %c0_i32_0 = arith.constant 0 : i32
    %c0_i32_1 = arith.constant 0 : i32
    return %c0_i32, %c0_i32_0 : i32, i32
  }
  func.func @transform_1(%arg0: i32) -> (i32, i32) {
    %c0_i32 = arith.constant 0 : i32
    %c0_i32_0 = arith.constant 0 : i32
    %c0_i32_1 = arith.constant 0 : i32
    return %c0_i32, %c0_i32_0 : i32, i32
  }
  func.func @transform_2(%arg0: i32) -> (i32, i32) {
    %c0_i32 = arith.constant 0 : i32
    %c0_i32_0 = arith.constant 0 : i32
    %c0_i32_1 = arith.constant 0 : i32
    return %c0_i32, %c0_i32_0 : i32, i32
  }
}

</mosaic_0001>

<llo_original>
// kernel: tpu_custom_call.1
$region0: #{tpu_custom_call.1}
  #allocation0 [shape = 'u32[]', space=smem, size = 0x4, offset = 0x4, fixed_abs, tag = 'smem constant byte address 0x4 - core index']
  #allocation1 [shape = 'u32[72,128]{1,0:T(1,128)}', space=vmem, size = 0x9000, scoped, tag = 'internal scratch']
  %s0 = inlined_call_operand.hbm [shape: f32[1376,128], index: 0, kind: input, shape index: {}]
  %s1 = inlined_call_operand.hbm [shape: f32[3,128], index: 1, kind: input, shape index: {}]
  %s2 = inlined_call_operand.hbm [shape: f32[32,128], index: 2, kind: output, shape index: {}]
  %s3 = sld [smem:[#allocation0]]
  $region26: #{tpu_custom_call.1} parent=0
    _
  %s5 = ssub.s32 1, %s3
  %s6 = scalar_select 0, %s5, %s3
  $region1: #{tpu_custom_call.1} parent=0
    #allocation2 [shape = 'u8[704512]{0}', space=vmem, size = 0xac000, scoped, tag = 'input window, operand 0, single buffered']
    #allocation3 [shape = 's32[1]{0}', space=sflag, size = 0x4, scoped, tag = 'scoped memory for tpu_custom_call.1']
    #allocation4 [shape = 's32[1]{0}', space=sflag, size = 0x4, scoped, tag = 'scoped memory for tpu_custom_call.1']
    #allocation5 [shape = 'u8[2048]{0}', space=vmem, size = 0x800, scoped, tag = 'input window, operand 1, single buffered']
    #allocation6 [shape = 's32[1]{0}', space=sflag, size = 0x4, scoped, tag = 'scoped memory for tpu_custom_call.1']
    #allocation7 [shape = 'u8[16384]{0}', space=vmem, size = 0x4000, scoped, tag = 'output window, operand 0, single buffered']
    %7 = vsyncpa [#allocation3], 0
    %8 = vsyncpa [#allocation6], 0
    %9 = vsyncpa [#allocation4], 0
    // Predicated region
    $region2: #{tpu_custom_call.1} parent=1 // pred_check
      _
    $region3: #{tpu_custom_call.1} parent=1 // pred_check_branch
      %11 = sbr.rel (0) target = $region5
    $region4: #{tpu_custom_call.1} parent=1 // pred_region
      %13 = vsyncadd [#allocation3], 0
      %s14 = sshll.u32 %s0, 4
      %s15 = int_to_ptr.hbm [resolvable:$true] %s14
      %s16 = sshll.u32 [#allocation2], 4
      %s17 = int_to_ptr.vmem [resolvable:$true] %s16
      %22 = dma.hbm_to_vmem [thread:$0]  %s15, 22016, %s17, [#allocation3], 128, 128, 8
    $region5: #{tpu_custom_call.1} parent=1 // pred_fallthru
      _
    // Predicated region
    $region6: #{tpu_custom_call.1} parent=1 // pred_check
      _
    $region7: #{tpu_custom_call.1} parent=1 // pred_check_branch
      %24 = sbr.rel (0) target = $region9
    $region8: #{tpu_custom_call.1} parent=1 // pred_region
      %26 = vsyncadd [#allocation6], 0
      %s28 = sshll.u32 %s1, 4
      %s29 = int_to_ptr.hbm [resolvable:$true] %s28
      %s30 = sshll.u32 [#allocation5], 4
      %s31 = int_to_ptr.vmem [resolvable:$true] %s30
      %33 = dma.hbm_to_vmem [thread:$0]  %s29, 64, %s31, [#allocation6]
    $region9: #{tpu_custom_call.1} parent=1 // pred_fallthru
      _
    // Predicated region
    $region10: #{tpu_custom_call.1} parent=1 // pred_check
      _
    $region11: #{tpu_custom_call.1} parent=1 // pred_check_branch
      %35 = sbr.rel (0) target = $region13
    $region12: #{tpu_custom_call.1} parent=1 // pred_region
      %37 = dma.done [#allocation3], 22016
    $region13: #{tpu_custom_call.1} parent=1 // pred_fallthru
      _
    // Predicated region
    $region14: #{tpu_custom_call.1} parent=1 // pred_check
      _
    $region15: #{tpu_custom_call.1} parent=1 // pred_check_branch
      %39 = sbr.rel (0) target = $region17
    $region16: #{tpu_custom_call.1} parent=1 // pred_region
      %41 = dma.done [#allocation6], 64
    $region17: #{tpu_custom_call.1} parent=1 // pred_fallthru
      _
    %v42 = vld [vmem:[#allocation5] sm:$0x7]
    %v43 = vld [vmem:[#allocation2] sm:$0xff]
    %v44 = vld [vmem:[#allocation2 + $0x8] sm:$0xff]
    %v45 = vld [vmem:[#allocation2 + $0x10] sm:$0xff]
    %v46 = vld [vmem:[#allocation2 + $0x18] sm:$0xff]
    %v47 = vld [vmem:[#allocation2 + $0x20] sm:$0xff]
    %v48 = vld [vmem:[#allocation2 + $0x28] sm:$0xff]
    %v49 = vld [vmem:[#allocation2 + $0x30] sm:$0xff]
    %v50 = vld [vmem:[#allocation2 + $0x38] sm:$0xff]
    %v51 = vld [vmem:[#allocation2 + $0x40] sm:$0xff]
    %v52 = vld [vmem:[#allocation2 + $0x48] sm:$0xff]
    %v53 = vld [vmem:[#allocation2 + $0x50] sm:$0xff]
    %v54 = vld [vmem:[#allocation2 + $0x58] sm:$0xff]
    %v55 = vld [vmem:[#allocation2 + $0x60] sm:$0xff]
    %v56 = vld [vmem:[#allocation2 + $0x68] sm:$0xff]
    %v57 = vld [vmem:[#allocation2 + $0x70] sm:$0xff]
    %v58 = vld [vmem:[#allocation2 + $0x78] sm:$0xff]
    %v59 = vld [vmem:[#allocation2 + $0x80] sm:$0xff]
    %v60 = vld [vmem:[#allocation2 + $0x88] sm:$0xff]
    %v61 = vld [vmem:[#allocation2 + $0x90] sm:$0xff]
    %v62 = vld [vmem:[#allocation2 + $0x98] sm:$0xff]
    %v63 = vld [vmem:[#allocation2 + $0xa0] sm:$0xff]
    %v64 = vld [vmem:[#allocation2 + $0xa8] sm:$0xff]
    %v65 = vld [vmem:[#allocation2 + $0xb0] sm:$0xff]
    %v66 = vld [vmem:[#allocation2 + $0xb8] sm:$0xff]
    %v67 = vld [vmem:[#allocation2 + $0xc0] sm:$0xff]
    %v68 = vld [vmem:[#allocation2 + $0xc8] sm:$0xff]
    %v69 = vld [vmem:[#allocation2 + $0xd0] sm:$0xff]
    %v70 = vld [vmem:[#allocation2 + $0xd8] sm:$0xff]
    %v71 = vld [vmem:[#allocation2 + $0xe0] sm:$0xff]
    %v72 = vld [vmem:[#allocation2 + $0xe8] sm:$0xff]
    %v73 = vld [vmem:[#allocation2 + $0xf0] sm:$0xff]
    %v74 = vld [vmem:[#allocation2 + $0xf8] sm:$0xff]
    %v75 = vperm.slane %v42, 0
    %76 = vmatpush.msra.mxu0 %v74
    %77 = vmatpush.msra.mxu0 %v73
    %78 = vmatpush.msra.mxu0 %v72
    %79 = vmatpush.msra.mxu0 %v71
    %80 = vmatpush.msra.mxu0 %v70
    %81 = vmatpush.msra.mxu0 %v69
    %82 = vmatpush.msra.mxu0 %v68
    %83 = vmatpush.msra.mxu0 %v67
    %84 = vmatpush.msra.mxu0 %v66
    %85 = vmatpush.msra.mxu0 %v65
    %86 = vmatpush.msra.mxu0 %v64
    %87 = vmatpush.msra.mxu0 %v63
    %88 = vmatpush.msra.mxu0 %v62
    %89 = vmatpush.msra.mxu0 %v61
    %90 = vmatpush.msra.mxu0 %v60
    %91 = vmatpush.msra.mxu0 %v59
    %92 = vmatmul.f32.gmra.mxu0 %v43
    %v93 = vpop.f32.mrf.mxu0
    %v94 = vadd.f32 %v75, %v93
    %95 = vmatmul.f32.gmra.mxu0 %v44
    %v96 = vpop.f32.mrf.mxu0
    %v97 = vadd.f32 %v75, %v96
    %98 = vmatmul.f32.gmra.mxu0 %v45
    %v99 = vpop.f32.mrf.mxu0
    %v100 = vadd.f32 %v75, %v99
    %101 = vmatmul.f32.gmra.mxu0 %v46
    %v102 = vpop.f32.mrf.mxu0
    %v103 = vadd.f32 %v75, %v102
    %104 = vmatmul.f32.gmra.mxu0 %v47
    %v105 = vpop.f32.mrf.mxu0
    %v106 = vadd.f32 %v75, %v105
    %107 = vmatmul.f32.gmra.mxu0 %v48
    %v108 = vpop.f32.mrf.mxu0
    %v109 = vadd.f32 %v75, %v108
    %110 = vmatmul.f32.gmra.mxu0 %v49
    %v111 = vpop.f32.mrf.mxu0
    %v112 = vadd.f32 %v75, %v111
    %113 = vmatmul.f32.gmra.mxu0 %v50
    %v114 = vpop.f32.mrf.mxu0
    %v115 = vadd.f32 %v75, %v114
    %116 = vmatmul.f32.gmra.mxu0 %v51
    %v117 = vpop.f32.mrf.mxu0
    %v118 = vadd.f32 %v75, %v117
    %119 = vmatmul.f32.gmra.mxu0 %v52
    %v120 = vpop.f32.mrf.mxu0
    %v121 = vadd.f32 %v75, %v120
    %122 = vmatmul.f32.gmra.mxu0 %v53
    %v123 = vpop.f32.mrf.mxu0
    %v124 = vadd.f32 %v75, %v123
    %125 = vmatmul.f32.gmra.mxu0 %v54
    %v126 = vpop.f32.mrf.mxu0
    %v127 = vadd.f32 %v75, %v126
    %128 = vmatmul.f32.gmra.mxu0 %v55
    %v129 = vpop.f32.mrf.mxu0
    %v130 = vadd.f32 %v75, %v129
    %131 = vmatmul.f32.gmra.mxu0 %v56
    %v132 = vpop.f32.mrf.mxu0
    %v133 = vadd.f32 %v75, %v132
    %134 = vmatmul.f32.gmra.mxu0 %v57
    %v135 = vpop.f32.mrf.mxu0
    %v136 = vadd.f32 %v75, %v135
    %137 = vmatmul.f32.gmra.mxu0 %v58
    %v138 = vpop.f32.mrf.mxu0
    %v139 = vadd.f32 %v75, %v138
    %140 = vdwg.mxu0
    %v141 = vmax.f32 %v94, 0.0
    %v142 = vmax.f32 %v97, 0.0
    %v143 = vmax.f32 %v100, 0.0
    %v144 = vmax.f32 %v103, 0.0
    %v145 = vmax.f32 %v106, 0.0
    %v146 = vmax.f32 %v109, 0.0
    %v147 = vmax.f32 %v112, 0.0
    %v148 = vmax.f32 %v115, 0.0
    %v149 = vmax.f32 %v118, 0.0
    %v150 = vmax.f32 %v121, 0.0
    %v151 = vmax.f32 %v124, 0.0
    %v152 = vmax.f32 %v127, 0.0
    %v153 = vmax.f32 %v130, 0.0
    %v154 = vmax.f32 %v133, 0.0
    %v155 = vmax.f32 %v136, 0.0
    %v156 = vmax.f32 %v139, 0.0
    %v157 = vld [vmem:[#allocation2 + $0x100] sm:$0xff]
    %v158 = vld [vmem:[#allocation2 + $0x108] sm:$0xff]
    %v159 = vld [vmem:[#allocation2 + $0x110] sm:$0xff]
    %v160 = vld [vmem:[#allocation2 + $0x118] sm:$0xff]
    %v161 = vld [vmem:[#allocation2 + $0x120] sm:$0xff]
    %v162 = vld [vmem:[#allocation2 + $0x128] sm:$0xff]
    %v163 = vld [vmem:[#allocation2 + $0x130] sm:$0xff]
    %v164 = vld [vmem:[#allocation2 + $0x138] sm:$0xff]
    %v165 = vld [vmem:[#allocation2 + $0x140] sm:$0xff]
    %v166 = vld [vmem:[#allocation2 + $0x148] sm:$0xff]
    %v167 = vld [vmem:[#allocation2 + $0x150] sm:$0xff]
    %v168 = vld [vmem:[#allocation2 + $0x158] sm:$0xff]
    %v169 = vld [vmem:[#allocation2 + $0x160] sm:$0xff]
    %v170 = vld [vmem:[#allocation2 + $0x168] sm:$0xff]
    %v171 = vld [vmem:[#allocation2 + $0x170] sm:$0xff]
    %v172 = vld [vmem:[#allocation2 + $0x178] sm:$0xff]
    %v173 = vld [vmem:[#allocation2 + $0x180] sm:$0xff]
    %v174 = vld [vmem:[#allocation2 + $0x188] sm:$0xff]
    %v175 = vld [vmem:[#allocation2 + $0x190] sm:$0xff]
    %v176 = vld [vmem:[#allocation2 + $0x198] sm:$0xff]
    %v177 = vld [vmem:[#allocation2 + $0x1a0] sm:$0xff]
    %v178 = vld [vmem:[#allocation2 + $0x1a8] sm:$0xff]
    %v179 = vld [vmem:[#allocation2 + $0x1b0] sm:$0xff]
    %v180 = vld [vmem:[#allocation2 + $0x1b8] sm:$0xff]
    %v181 = vld [vmem:[#allocation2 + $0x1c0] sm:$0xff]
    %v182 = vld [vmem:[#allocation2 + $0x1c8] sm:$0xff]
    %v183 = vld [vmem:[#allocation2 + $0x1d0] sm:$0xff]
    %v184 = vld [vmem:[#allocation2 + $0x1d8] sm:$0xff]
    %v185 = vld [vmem:[#allocation2 + $0x1e0] sm:$0xff]
    %v186 = vld [vmem:[#allocation2 + $0x1e8] sm:$0xff]
    %v187 = vld [vmem:[#allocation2 + $0x1f0] sm:$0xff]
    %v188 = vld [vmem:[#allocation2 + $0x1f8] sm:$0xff]
    %v189 = vsub.f32 %v141, %v173
    %v190 = vsub.f32 %v142, %v174
    %v191 = vsub.f32 %v143, %v175
    %v192 = vsub.f32 %v144, %v176
    %v193 = vsub.f32 %v145, %v177
    %v194 = vsub.f32 %v146, %v178
    %v195 = vsub.f32 %v147, %v179
    %v196 = vsub.f32 %v148, %v180
    %v197 = vsub.f32 %v149, %v181
    %v198 = vsub.f32 %v150, %v182
    %v199 = vsub.f32 %v151, %v183
    %v200 = vsub.f32 %v152, %v184
    %v201 = vsub.f32 %v153, %v185
    %v202 = vsub.f32 %v154, %v186
    %v203 = vsub.f32 %v155, %v187
    %v204 = vsub.f32 %v156, %v188
    %v205 = vld [vmem:[#allocation2 + $0x200] sm:$0xff]
    %v206 = vld [vmem:[#allocation2 + $0x208] sm:$0xff]
    %v207 = vld [vmem:[#allocation2 + $0x210] sm:$0xff]
    %v208 = vld [vmem:[#allocation2 + $0x218] sm:$0xff]
    %v209 = vld [vmem:[#allocation2 + $0x220] sm:$0xff]
    %v210 = vld [vmem:[#allocation2 + $0x228] sm:$0xff]
    %v211 = vld [vmem:[#allocation2 + $0x230] sm:$0xff]
    %v212 = vld [vmem:[#allocation2 + $0x238] sm:$0xff]
    %v213 = vld [vmem:[#allocation2 + $0x240] sm:$0xff]
    %v214 = vld [vmem:[#allocation2 + $0x248] sm:$0xff]
    %v215 = vld [vmem:[#allocation2 + $0x250] sm:$0xff]
    %v216 = vld [vmem:[#allocation2 + $0x258] sm:$0xff]
    %v217 = vld [vmem:[#allocation2 + $0x260] sm:$0xff]
    %v218 = vld [vmem:[#allocation2 + $0x268] sm:$0xff]
    %v219 = vld [vmem:[#allocation2 + $0x270] sm:$0xff]
    %v220 = vld [vmem:[#allocation2 + $0x278] sm:$0xff]
    %221 = vmatpush.msra.mxu0 %v204
    %222 = vmatpush.msra.mxu0 %v203
    %223 = vmatpush.msra.mxu0 %v202
    %224 = vmatpush.msra.mxu0 %v201
    %225 = vmatpush.msra.mxu0 %v200
    %226 = vmatpush.msra.mxu0 %v199
    %227 = vmatpush.msra.mxu0 %v198
    %228 = vmatpush.msra.mxu0 %v197
    %229 = vmatpush.msra.mxu0 %v196
    %230 = vmatpush.msra.mxu0 %v195
    %231 = vmatpush.msra.mxu0 %v194
    %232 = vmatpush.msra.mxu0 %v193
    %233 = vmatpush.msra.mxu0 %v192
    %234 = vmatpush.msra.mxu0 %v191
    %235 = vmatpush.msra.mxu0 %v190
    %236 = vmatpush.msra.mxu0 %v189
    %237 = vmatmul.f32.gmra.mxu0 %v157
    %v238 = vpop.f32.mrf.mxu0
    %v239 = vadd.f32 %v205, %v238
    %240 = vmatmul.f32.gmra.mxu0 %v158
    %v241 = vpop.f32.mrf.mxu0
    %v242 = vadd.f32 %v206, %v241
    %243 = vmatmul.f32.gmra.mxu0 %v159
    %v244 = vpop.f32.mrf.mxu0
    %v245 = vadd.f32 %v207, %v244
    %246 = vmatmul.f32.gmra.mxu0 %v160
    %v247 = vpop.f32.mrf.mxu0
    %v248 = vadd.f32 %v208, %v247
    %249 = vmatmul.f32.gmra.mxu0 %v161
    %v250 = vpop.f32.mrf.mxu0
    %v251 = vadd.f32 %v209, %v250
    %252 = vmatmul.f32.gmra.mxu0 %v162
    %v253 = vpop.f32.mrf.mxu0
    %v254 = vadd.f32 %v210, %v253
    %255 = vmatmul.f32.gmra.mxu0 %v163
    %v256 = vpop.f32.mrf.mxu0
    %v257 = vadd.f32 %v211, %v256
    %258 = vmatmul.f32.gmra.mxu0 %v164
    %v259 = vpop.f32.mrf.mxu0
    %v260 = vadd.f32 %v212, %v259
    %261 = vmatmul.f32.gmra.mxu0 %v165
    %v262 = vpop.f32.mrf.mxu0
    %v263 = vadd.f32 %v213, %v262
    %264 = vmatmul.f32.gmra.mxu0 %v166
    %v265 = vpop.f32.mrf.mxu0
    %v266 = vadd.f32 %v214, %v265
    %267 = vmatmul.f32.gmra.mxu0 %v167
    %v268 = vpop.f32.mrf.mxu0
    %v269 = vadd.f32 %v215, %v268
    %270 = vmatmul.f32.gmra.mxu0 %v168
    %v271 = vpop.f32.mrf.mxu0
    %v272 = vadd.f32 %v216, %v271
    %273 = vmatmul.f32.gmra.mxu0 %v169
    %v274 = vpop.f32.mrf.mxu0
    %v275 = vadd.f32 %v217, %v274
    %276 = vmatmul.f32.gmra.mxu0 %v170
    %v277 = vpop.f32.mrf.mxu0
    %v278 = vadd.f32 %v218, %v277
    %279 = vmatmul.f32.gmra.mxu0 %v171
    %v280 = vpop.f32.mrf.mxu0
    %v281 = vadd.f32 %v219, %v280
    %282 = vmatmul.f32.gmra.mxu0 %v172
    %v283 = vpop.f32.mrf.mxu0
    %v284 = vadd.f32 %v220, %v283
    %285 = vdwg.mxu0
    %v286 = vld [vmem:[#allocation2 + $0x280] sm:$0xff]
    %v287 = vld [vmem:[#allocation2 + $0x288] sm:$0xff]
    %v288 = vld [vmem:[#allocation2 + $0x290] sm:$0xff]
    %v289 = vld [vmem:[#allocation2 + $0x298] sm:$0xff]
    %v290 = vld [vmem:[#allocation2 + $0x2a0] sm:$0xff]
    %v291 = vld [vmem:[#allocation2 + $0x2a8] sm:$0xff]
    %v292 = vld [vmem:[#allocation2 + $0x2b0] sm:$0xff]
    %v293 = vld [vmem:[#allocation2 + $0x2b8] sm:$0xff]
    %v294 = vld [vmem:[#allocation2 + $0x2c0] sm:$0xff]
    %v295 = vld [vmem:[#allocation2 + $0x2c8] sm:$0xff]
    %v296 = vld [vmem:[#allocation2 + $0x2d0] sm:$0xff]
    %v297 = vld [vmem:[#allocation2 + $0x2d8] sm:$0xff]
    %v298 = vld [vmem:[#allocation2 + $0x2e0] sm:$0xff]
    %v299 = vld [vmem:[#allocation2 + $0x2e8] sm:$0xff]
    %v300 = vld [vmem:[#allocation2 + $0x2f0] sm:$0xff]
    %v301 = vld [vmem:[#allocation2 + $0x2f8] sm:$0xff]
    %302 = vmatpush.msra.mxu0 %v301
    %303 = vmatpush.msra.mxu0 %v300
    %304 = vmatpush.msra.mxu0 %v299
    %305 = vmatpush.msra.mxu0 %v298
    %306 = vmatpush.msra.mxu0 %v297
    %307 = vmatpush.msra.mxu0 %v296
    %308 = vmatpush.msra.mxu0 %v295
    %309 = vmatpush.msra.mxu0 %v294
    %310 = vmatpush.msra.mxu0 %v293
    %311 = vmatpush.msra.mxu0 %v292
    %312 = vmatpush.msra.mxu0 %v291
    %313 = vmatpush.msra.mxu0 %v290
    %314 = vmatpush.msra.mxu0 %v289
    %315 = vmatpush.msra.mxu0 %v288
    %316 = vmatpush.msra.mxu0 %v287
    %317 = vmatpush.msra.mxu0 %v286
    %318 = vmatmul.f32.gmra.mxu0 %v239
    %v319 = vpop.f32.mrf.mxu0
    %v320 = vadd.f32 0.0, %v319
    %321 = vmatmul.f32.gmra.mxu0 %v242
    %v322 = vpop.f32.mrf.mxu0
    %v323 = vadd.f32 0.0, %v322
    %324 = vmatmul.f32.gmra.mxu0 %v245
    %v325 = vpop.f32.mrf.mxu0
    %v326 = vadd.f32 0.0, %v325
    %327 = vmatmul.f32.gmra.mxu0 %v248
    %v328 = vpop.f32.mrf.mxu0
    %v329 = vadd.f32 0.0, %v328
    %330 = vmatmul.f32.gmra.mxu0 %v251
    %v331 = vpop.f32.mrf.mxu0
    %v332 = vadd.f32 0.0, %v331
    %333 = vmatmul.f32.gmra.mxu0 %v254
    %v334 = vpop.f32.mrf.mxu0
    %v335 = vadd.f32 0.0, %v334
    %336 = vmatmul.f32.gmra.mxu0 %v257
    %v337 = vpop.f32.mrf.mxu0
    %v338 = vadd.f32 0.0, %v337
    %339 = vmatmul.f32.gmra.mxu0 %v260
    %v340 = vpop.f32.mrf.mxu0
    %v341 = vadd.f32 0.0, %v340
    %342 = vmatmul.f32.gmra.mxu0 %v263
    %v343 = vpop.f32.mrf.mxu0
    %v344 = vadd.f32 0.0, %v343
    %345 = vmatmul.f32.gmra.mxu0 %v266
    %v346 = vpop.f32.mrf.mxu0
    %v347 = vadd.f32 0.0, %v346
    %348 = vmatmul.f32.gmra.mxu0 %v269
    %v349 = vpop.f32.mrf.mxu0
    %v350 = vadd.f32 0.0, %v349
    %351 = vmatmul.f32.gmra.mxu0 %v272
    %v352 = vpop.f32.mrf.mxu0
    %v353 = vadd.f32 0.0, %v352
    %354 = vmatmul.f32.gmra.mxu0 %v275
    %v355 = vpop.f32.mrf.mxu0
    %v356 = vadd.f32 0.0, %v355
    %357 = vmatmul.f32.gmra.mxu0 %v278
    %v358 = vpop.f32.mrf.mxu0
    %v359 = vadd.f32 0.0, %v358
    %360 = vmatmul.f32.gmra.mxu0 %v281
    %v361 = vpop.f32.mrf.mxu0
    %v362 = vadd.f32 0.0, %v361
    %363 = vmatmul.f32.gmra.mxu0 %v284
    %v364 = vpop.f32.mrf.mxu0
    %v365 = vadd.f32 0.0, %v364
    %366 = vdwg.mxu0
    %v367 = vperm.slane %v42, 1
    %v368 = vadd.f32 %v367, %v320
    %v369 = vadd.f32 %v367, %v323
    %v370 = vadd.f32 %v367, %v326
    %v371 = vadd.f32 %v367, %v329
    %v372 = vadd.f32 %v367, %v332
    %v373 = vadd.f32 %v367, %v335
    %v374 = vadd.f32 %v367, %v338
    %v375 = vadd.f32 %v367, %v341
    %v376 = vadd.f32 %v367, %v344
    %v377 = vadd.f32 %v367, %v347
    %v378 = vadd.f32 %v367, %v350
    %v379 = vadd.f32 %v367, %v353
    %v380 = vadd.f32 %v367, %v356
    %v381 = vadd.f32 %v367, %v359
    %v382 = vadd.f32 %v367, %v362
    %v383 = vadd.f32 %v367, %v365
    %v384 = vmax.f32 %v368, 0.0
    %v385 = vmax.f32 %v369, 0.0
    %v386 = vmax.f32 %v370, 0.0
    %v387 = vmax.f32 %v371, 0.0
    %v388 = vmax.f32 %v372, 0.0
    %v389 = vmax.f32 %v373, 0.0
    %v390 = vmax.f32 %v374, 0.0
    %v391 = vmax.f32 %v375, 0.0
    %v392 = vmax.f32 %v376, 0.0
    %v393 = vmax.f32 %v377, 0.0
    %v394 = vmax.f32 %v378, 0.0
    %v395 = vmax.f32 %v379, 0.0
    %v396 = vmax.f32 %v380, 0.0
    %v397 = vmax.f32 %v381, 0.0
    %v398 = vmax.f32 %v382, 0.0
    %v399 = vmax.f32 %v383, 0.0
    %v400 = vld [vmem:[#allocation2 + $0x300] sm:$0xff]
    %v401 = vld [vmem:[#allocation2 + $0x308] sm:$0xff]
    %v402 = vld [vmem:[#allocation2 + $0x310] sm:$0xff]
    %v403 = vld [vmem:[#allocation2 + $0x318] sm:$0xff]
    %v404 = vld [vmem:[#allocation2 + $0x320] sm:$0xff]
    %v405 = vld [vmem:[#allocation2 + $0x328] sm:$0xff]
    %v406 = vld [vmem:[#allocation2 + $0x330] sm:$0xff]
    %v407 = vld [vmem:[#allocation2 + $0x338] sm:$0xff]
    %v408 = vld [vmem:[#allocation2 + $0x340] sm:$0xff]
    %v409 = vld [vmem:[#allocation2 + $0x348] sm:$0xff]
    %v410 = vld [vmem:[#allocation2 + $0x350] sm:$0xff]
    %v411 = vld [vmem:[#allocation2 + $0x358] sm:$0xff]
    %v412 = vld [vmem:[#allocation2 + $0x360] sm:$0xff]
    %v413 = vld [vmem:[#allocation2 + $0x368] sm:$0xff]
    %v414 = vld [vmem:[#allocation2 + $0x370] sm:$0xff]
    %v415 = vld [vmem:[#allocation2 + $0x378] sm:$0xff]
    %v416 = vld [vmem:[#allocation2 + $0x380] sm:$0xff]
    %v417 = vld [vmem:[#allocation2 + $0x388] sm:$0xff]
    %v418 = vld [vmem:[#allocation2 + $0x390] sm:$0xff]
    %v419 = vld [vmem:[#allocation2 + $0x398] sm:$0xff]
    %v420 = vsub.f32 %v368, %v404
    %v421 = vsub.f32 %v369, %v405
    %v422 = vsub.f32 %v370, %v406
    %v423 = vsub.f32 %v371, %v407
    %v424 = vsub.f32 %v372, %v408
    %v425 = vsub.f32 %v373, %v409
    %v426 = vsub.f32 %v374, %v410
    %v427 = vsub.f32 %v375, %v411
    %v428 = vsub.f32 %v376, %v412
    %v429 = vsub.f32 %v377, %v413
    %v430 = vsub.f32 %v378, %v414
    %v431 = vsub.f32 %v379, %v415
    %v432 = vsub.f32 %v380, %v416
    %v433 = vsub.f32 %v381, %v417
    %v434 = vsub.f32 %v382, %v418
    %v435 = vsub.f32 %v383, %v419
    %v436 = vld [vmem:[#allocation2 + $0x3a0] sm:$0xff]
    %v437 = vld [vmem:[#allocation2 + $0x3a8] sm:$0xff]
    %v438 = vld [vmem:[#allocation2 + $0x3b0] sm:$0xff]
    %v439 = vld [vmem:[#allocation2 + $0x3b8] sm:$0xff]
    %440 = vmatpush.msra.mxu0 %v435
    %441 = vmatpush.msra.mxu0 %v434
    %442 = vmatpush.msra.mxu0 %v433
    %443 = vmatpush.msra.mxu0 %v432
    %444 = vmatpush.msra.mxu0 %v431
    %445 = vmatpush.msra.mxu0 %v430
    %446 = vmatpush.msra.mxu0 %v429
    %447 = vmatpush.msra.mxu0 %v428
    %448 = vmatpush.msra.mxu0 %v427
    %449 = vmatpush.msra.mxu0 %v426
    %450 = vmatpush.msra.mxu0 %v425
    %451 = vmatpush.msra.mxu0 %v424
    %452 = vmatpush.msra.mxu0 %v423
    %453 = vmatpush.msra.mxu0 %v422
    %454 = vmatpush.msra.mxu0 %v421
    %455 = vmatpush.msra.mxu0 %v420
    %456 = vmatmul.f32.gmra.mxu0 %v400
    %v457 = vpop.f32.mrf.mxu0
    %v458 = vadd.f32 %v436, %v457
    %459 = vmatmul.f32.gmra.mxu0 %v401
    %v460 = vpop.f32.mrf.mxu0
    %v461 = vadd.f32 %v437, %v460
    %462 = vmatmul.f32.gmra.mxu0 %v402
    %v463 = vpop.f32.mrf.mxu0
    %v464 = vadd.f32 %v438, %v463
    %465 = vmatmul.f32.gmra.mxu0 %v403
    %v466 = vpop.f32.mrf.mxu0
    %v467 = vadd.f32 %v439, %v466
    %468 = vdwg.mxu0
    %v469 = vld [vmem:[#allocation2 + $0x3c0] sm:$0xff]
    %v470 = vld [vmem:[#allocation2 + $0x3c8] sm:$0xff]
    %v471 = vld [vmem:[#allocation2 + $0x3d0] sm:$0xff]
    %v472 = vld [vmem:[#allocation2 + $0x3d8] sm:$0xff]
    %v473 = vld [vmem:[#allocation2 + $0x3e0] sm:$0xff]
    %v474 = vld [vmem:[#allocation2 + $0x3e8] sm:$0xff]
    %v475 = vld [vmem:[#allocation2 + $0x3f0] sm:$0xff]
    %v476 = vld [vmem:[#allocation2 + $0x3f8] sm:$0xff]
    %v477 = vld [vmem:[#allocation2 + $0x400] sm:$0xff]
    %v478 = vld [vmem:[#allocation2 + $0x408] sm:$0xff]
    %v479 = vld [vmem:[#allocation2 + $0x410] sm:$0xff]
    %v480 = vld [vmem:[#allocation2 + $0x418] sm:$0xff]
    %v481 = vld [vmem:[#allocation2 + $0x420] sm:$0xff]
    %v482 = vld [vmem:[#allocation2 + $0x428] sm:$0xff]
    %v483 = vld [vmem:[#allocation2 + $0x430] sm:$0xff]
    %v484 = vld [vmem:[#allocation2 + $0x438] sm:$0xff]
    %485 = vmatpush.msra.mxu0 %v484
    %486 = vmatpush.msra.mxu0 %v483
    %487 = vmatpush.msra.mxu0 %v482
    %488 = vmatpush.msra.mxu0 %v481
    %489 = vmatpush.msra.mxu0 %v480
    %490 = vmatpush.msra.mxu0 %v479
    %491 = vmatpush.msra.mxu0 %v478
    %492 = vmatpush.msra.mxu0 %v477
    %493 = vmatpush.msra.mxu0 %v476
    %494 = vmatpush.msra.mxu0 %v475
    %495 = vmatpush.msra.mxu0 %v474
    %496 = vmatpush.msra.mxu0 %v473
    %497 = vmatpush.msra.mxu0 %v472
    %498 = vmatpush.msra.mxu0 %v471
    %499 = vmatpush.msra.mxu0 %v470
    %500 = vmatpush.msra.mxu0 %v469
    %501 = vmatmul.f32.gmra.mxu0 %v458
    %v502 = vpop.f32.mrf.mxu0
    %v503 = vadd.f32 0.0, %v502
    %504 = vmatmul.f32.gmra.mxu0 %v461
    %v505 = vpop.f32.mrf.mxu0
    %v506 = vadd.f32 0.0, %v505
    %507 = vmatmul.f32.gmra.mxu0 %v464
    %v508 = vpop.f32.mrf.mxu0
    %v509 = vadd.f32 0.0, %v508
    %510 = vmatmul.f32.gmra.mxu0 %v467
    %v511 = vpop.f32.mrf.mxu0
    %v512 = vadd.f32 0.0, %v511
    %513 = vdwg.mxu0
    %v514 = vperm.slane %v42, 2
    %v515 = vadd.f32 %v514, %v503
    %v516 = vadd.f32 %v514, %v506
    %v517 = vadd.f32 %v514, %v509
    %v518 = vadd.f32 %v514, %v512
    %v519 = vld [vmem:[#allocation2 + $0x440] sm:$0xff]
    %v520 = vld [vmem:[#allocation2 + $0x448] sm:$0xff]
    %v521 = vld [vmem:[#allocation2 + $0x450] sm:$0xff]
    %v522 = vld [vmem:[#allocation2 + $0x458] sm:$0xff]
    %v523 = vld [vmem:[#allocation2 + $0x460] sm:$0xff]
    %v524 = vld [vmem:[#allocation2 + $0x468] sm:$0xff]
    %v525 = vld [vmem:[#allocation2 + $0x470] sm:$0xff]
    %v526 = vld [vmem:[#allocation2 + $0x478] sm:$0xff]
    %v527 = vld [vmem:[#allocation2 + $0x480] sm:$0xff]
    %v528 = vld [vmem:[#allocation2 + $0x488] sm:$0xff]
    %v529 = vld [vmem:[#allocation2 + $0x490] sm:$0xff]
    %v530 = vld [vmem:[#allocation2 + $0x498] sm:$0xff]
    %v531 = vld [vmem:[#allocation2 + $0x4a0] sm:$0xff]
    %v532 = vld [vmem:[#allocation2 + $0x4a8] sm:$0xff]
    %v533 = vld [vmem:[#allocation2 + $0x4b0] sm:$0xff]
    %v534 = vld [vmem:[#allocation2 + $0x4b8] sm:$0xff]
    %v535 = vsub.f32 %v384, %v519
    %v536 = vsub.f32 %v385, %v520
    %v537 = vsub.f32 %v386, %v521
    %v538 = vsub.f32 %v387, %v522
    %v539 = vsub.f32 %v388, %v523
    %v540 = vsub.f32 %v389, %v524
    %v541 = vsub.f32 %v390, %v525
    %v542 = vsub.f32 %v391, %v526
    %v543 = vsub.f32 %v392, %v527
    %v544 = vsub.f32 %v393, %v528
    %v545 = vsub.f32 %v394, %v529
    %v546 = vsub.f32 %v395, %v530
    %v547 = vsub.f32 %v396, %v531
    %v548 = vsub.f32 %v397, %v532
    %v549 = vsub.f32 %v398, %v533
    %v550 = vsub.f32 %v399, %v534
    %v551 = vld [vmem:[#allocation2 + $0x4c0] sm:$0xff]
    %v552 = vld [vmem:[#allocation2 + $0x4c8] sm:$0xff]
    %v553 = vld [vmem:[#allocation2 + $0x4d0] sm:$0xff]
    %v554 = vld [vmem:[#allocation2 + $0x4d8] sm:$0xff]
    %555 = vmatpush.msra.mxu0 %v550
    %556 = vmatpush.msra.mxu0 %v549
    %557 = vmatpush.msra.mxu0 %v548
    %558 = vmatpush.msra.mxu0 %v547
    %559 = vmatpush.msra.mxu0 %v546
    %560 = vmatpush.msra.mxu0 %v545
    %561 = vmatpush.msra.mxu0 %v544
    %562 = vmatpush.msra.mxu0 %v543
    %563 = vmatpush.msra.mxu0 %v542
    %564 = vmatpush.msra.mxu0 %v541
    %565 = vmatpush.msra.mxu0 %v540
    %566 = vmatpush.msra.mxu0 %v539
    %567 = vmatpush.msra.mxu0 %v538
    %568 = vmatpush.msra.mxu0 %v537
    %569 = vmatpush.msra.mxu0 %v536
    %570 = vmatpush.msra.mxu0 %v535
    %571 = vmatmul.f32.gmra.mxu0 %v400
    %v572 = vpop.f32.mrf.mxu0
    %v573 = vadd.f32 %v551, %v572
    %574 = vmatmul.f32.gmra.mxu0 %v401
    %v575 = vpop.f32.mrf.mxu0
    %v576 = vadd.f32 %v552, %v575
    %577 = vmatmul.f32.gmra.mxu0 %v402
    %v578 = vpop.f32.mrf.mxu0
    %v579 = vadd.f32 %v553, %v578
    %580 = vmatmul.f32.gmra.mxu0 %v403
    %v581 = vpop.f32.mrf.mxu0
    %v582 = vadd.f32 %v554, %v581
    %583 = vdwg.mxu0
    %v584 = vld [vmem:[#allocation2 + $0x4e0] sm:$0xff]
    %v585 = vld [vmem:[#allocation2 + $0x4e8] sm:$0xff]
    %v586 = vld [vmem:[#allocation2 + $0x4f0] sm:$0xff]
    %v587 = vld [vmem:[#allocation2 + $0x4f8] sm:$0xff]
    %v588 = vld [vmem:[#allocation2 + $0x500] sm:$0xff]
    %v589 = vld [vmem:[#allocation2 + $0x508] sm:$0xff]
    %v590 = vld [vmem:[#allocation2 + $0x510] sm:$0xff]
    %v591 = vld [vmem:[#allocation2 + $0x518] sm:$0xff]
    %v592 = vld [vmem:[#allocation2 + $0x520] sm:$0xff]
    %v593 = vld [vmem:[#allocation2 + $0x528] sm:$0xff]
    %v594 = vld [vmem:[#allocation2 + $0x530] sm:$0xff]
    %v595 = vld [vmem:[#allocation2 + $0x538] sm:$0xff]
    %v596 = vld [vmem:[#allocation2 + $0x540] sm:$0xff]
    %v597 = vld [vmem:[#allocation2 + $0x548] sm:$0xff]
    %v598 = vld [vmem:[#allocation2 + $0x550] sm:$0xff]
    %v599 = vld [vmem:[#allocation2 + $0x558] sm:$0xff]
    %600 = vmatpush.msra.mxu0 %v599
    %601 = vmatpush.msra.mxu0 %v598
    %602 = vmatpush.msra.mxu0 %v597
    %603 = vmatpush.msra.mxu0 %v596
    %604 = vmatpush.msra.mxu0 %v595
    %605 = vmatpush.msra.mxu0 %v594
    %606 = vmatpush.msra.mxu0 %v593
    %607 = vmatpush.msra.mxu0 %v592
    %608 = vmatpush.msra.mxu0 %v591
    %609 = vmatpush.msra.mxu0 %v590
    %610 = vmatpush.msra.mxu0 %v589
    %611 = vmatpush.msra.mxu0 %v588
    %612 = vmatpush.msra.mxu0 %v587
    %613 = vmatpush.msra.mxu0 %v586
    %614 = vmatpush.msra.mxu0 %v585
    %615 = vmatpush.msra.mxu0 %v584
    %616 = vmatmul.f32.gmra.mxu0 %v573
    %v617 = vpop.f32.mrf.mxu0
    %v618 = vadd.f32 0.0, %v617
    %619 = vmatmul.f32.gmra.mxu0 %v576
    %v620 = vpop.f32.mrf.mxu0
    %v621 = vadd.f32 0.0, %v620
    %622 = vmatmul.f32.gmra.mxu0 %v579
    %v623 = vpop.f32.mrf.mxu0
    %v624 = vadd.f32 0.0, %v623
    %625 = vmatmul.f32.gmra.mxu0 %v582
    %v626 = vpop.f32.mrf.mxu0
    %v627 = vadd.f32 0.0, %v626
    %628 = vdwg.mxu0
    %v629 = vadd.f32 %v515, %v618
    %v630 = vadd.f32 %v516, %v621
    %v631 = vadd.f32 %v517, %v624
    %v632 = vadd.f32 %v518, %v627
    %633 = vst [vmem:[#allocation7] sm:$0xff] %v629
    %634 = vst [vmem:[#allocation7 + $0x8] sm:$0xff] %v630
    %635 = vst [vmem:[#allocation7 + $0x10] sm:$0xff] %v631
    %636 = vst [vmem:[#allocation7 + $0x18] sm:$0xff] %v632
    // Predicated region
    $region18: #{tpu_custom_call.1} parent=1 // pred_check
      _
    $region19: #{tpu_custom_call.1} parent=1 // pred_check_branch
      %638 = sbr.rel (0) target = $region21
    $region20: #{tpu_custom_call.1} parent=1 // pred_region
      %640 = vsyncadd [#allocation4], 0
      %s641 = sshll.u32 [#allocation7], 4
      %s642 = int_to_ptr.vmem [resolvable:$true] %s641
      %s643 = sshll.u32 %s2, 4
      %s644 = int_to_ptr.hbm [resolvable:$true] %s643
      %649 = dma.vmem_to_hbm [thread:$0]  %s642, 512, %s644, [#allocation4], 128, 128, 8
    $region21: #{tpu_custom_call.1} parent=1 // pred_fallthru
      _
    // Predicated region
    $region22: #{tpu_custom_call.1} parent=1 // pred_check
      _
    $region23: #{tpu_custom_call.1} parent=1 // pred_check_branch
      %651 = sbr.rel (0) target = $region25
    $region24: #{tpu_custom_call.1} parent=1 // pred_region
      %653 = dma.done [#allocation4], 512
    $region25: #{tpu_custom_call.1} parent=1 // pred_fallthru
      _
    %654 = vsyncpa [#allocation3], 1
    %655 = vsyncpa [#allocation6], 1
    %656 = vsyncpa [#allocation4], 1

</llo_original>
